<compile_context>
chip_gen: v5e
topology: v5e:2x2
jax: 0.10.0
libtpu: 0.0.40
codegen_flags: <defaults>
</compile_context>

<pallas_src>
import jax
import jax.numpy as jnp
from jax.experimental import pallas as pl
from jax.experimental.pallas import tpu as pltpu

_MIB = 1024 * 1024


# ---------------------------------------------------------------------------
# Chip-aware sizing helpers
# ---------------------------------------------------------------------------
def _vmem_capacity_bytes():
    """Physical VMEM per TensorCore; conservative (v7x-like 64 MiB) fallback."""
    try:
        info = pltpu.get_tpu_info()
        cap = getattr(info, "vmem_capacity_bytes", None)
        if cap:
            return int(cap)
    except Exception:
        pass
    return 64 * _MIB


def _tile_budget():
    """Returns (target tile bytes, vmem_limit_bytes) for this chip generation."""
    cap = _vmem_capacity_bytes()
    if cap >= 100 * _MIB:
        # v5e / v6e: 128 MiB physical VMEM -> bigger tiles, fewer grid steps.
        # (v5e's scoped default is only 16 MiB, so the explicit limit matters.)
        return 8 * _MIB, 64 * _MIB
    # v7x-class: only 64 MiB per TC -> keep ~2 MiB tiles under a 32 MiB budget.
    return 2 * _MIB, 32 * _MIB


def _pick_lane_tile(L, target_elems):
    """Largest lane tile <= target that is a multiple of 128 and (preferably)
    divides L evenly, so the last tile is not a mostly-masked ragged edge."""
    target = max(128, (target_elems // 128) * 128)
    if L <= target:
        return L                       # full extent: always legal
    cand = target
    while cand >= 128:
        if L % cand == 0:
            return cand
        cand -= 128
    return target


def _pick_tiles(R, L, itemsize, tile_bytes):
    """Dtype- and chip-aware (row, lane) tile selection for the streaming op."""
    row_target = 256 if tile_bytes <= 4 * _MIB else 512
    rt = R if R <= row_target else row_target            # full extent or mult-of-8
    lane_target = max(128, tile_bytes // max(1, rt * itemsize))
    lt = _pick_lane_tile(L, lane_target)

    # Megacore (v7x has 2 TCs): make sure a "parallel" axis has >=2 steps
    # (ideally >=4) so both cores stream independently.
    lane_steps = pl.cdiv(L, lt)
    row_steps = pl.cdiv(R, rt)
    if row_steps * lane_steps < 4 and R >= 16:
        want_rows = max(2, -(-4 // lane_steps))          # ceil(4 / lane_steps)
        rt_new = -(-R // want_rows)                      # ceil(R / want_rows)
        rt_new = max(8, (rt_new // 8) * 8)               # keep sublane-aligned
        if rt_new < rt:
            rt = rt_new
    return rt, lt


# ---------------------------------------------------------------------------
# Kernel 1: conditioning MLPs -> gamma, beta  (runs once, off the hot path)
# ---------------------------------------------------------------------------
def _film_params_kernel(c_ref, w1_ref, b1_ref,
                        sw2_ref, sb2_ref, tw2_ref, tb2_ref,
                        gamma_ref, beta_ref):
    c = c_ref[...].astype(jnp.float32)

    # Fused first layer: one dot for both scale & shift networks, then ReLU.
    h = jnp.dot(c, w1_ref[...].astype(jnp.float32),
                preferred_element_type=jnp.float32) + b1_ref[...].astype(jnp.float32)
    h = jnp.maximum(h, 0.0)

    hidden = sw2_ref.shape[0]
    h_s = h[:, :hidden]
    h_t = h[:, hidden:]

    gamma_ref[...] = (jnp.dot(h_s, sw2_ref[...].astype(jnp.float32),
                              preferred_element_type=jnp.float32)
                      + sb2_ref[...].astype(jnp.float32))
    beta_ref[...] = (jnp.dot(h_t, tw2_ref[...].astype(jnp.float32),
                             preferred_element_type=jnp.float32)
                     + tb2_ref[...].astype(jnp.float32))


def _film_params(c, params, vmem_limit):
    (sw1, sb1, sw2, sb2, tw1, tb1, tw2, tb2) = params
    B, D = c.shape
    hidden = sw1.shape[1]
    C = sw2.shape[1]

    # Pack the two first-layer Linears into one weight (halves MXU pushes,
    # pads the wide MXU better for tiny conditioning dims).
    w1 = jnp.concatenate([sw1, tw1], axis=1)          # (D, 2*hidden)
    b1 = jnp.concatenate([sb1, tb1], axis=1)          # (1, 2*hidden)

    # Rough f32 footprint of the single-block kernel (inputs + activations +
    # outputs).  If it can't fit comfortably, fall back to plain XLA -- this
    # path runs once per call and is not performance critical.
    est_bytes = 4 * (B * D + D * 2 * hidden + 2 * hidden
                     + 2 * hidden * C + 2 * C
                     + B * 2 * hidden + 2 * B * C)
    if 2 * est_bytes > vmem_limit:
        cf = c.astype(jnp.float32)
        gamma = (jnp.maximum(cf @ sw1.astype(jnp.float32) + sb1.astype(jnp.float32), 0.0)
                 @ sw2.astype(jnp.float32) + sb2.astype(jnp.float32))
        beta = (jnp.maximum(cf @ tw1.astype(jnp.float32) + tb1.astype(jnp.float32), 0.0)
                @ tw2.astype(jnp.float32) + tb2.astype(jnp.float32))
        return gamma, beta

    vmem = pl.BlockSpec(memory_space=pltpu.MemorySpace.VMEM)
    gamma, beta = pl.pallas_call(
        _film_params_kernel,
        out_shape=(jax.ShapeDtypeStruct((B, C), jnp.float32),
                   jax.ShapeDtypeStruct((B, C), jnp.float32)),
        in_specs=[vmem] * 7,
        out_specs=(vmem, vmem),
        compiler_params=pltpu.CompilerParams(vmem_limit_bytes=vmem_limit),
    )(c, w1, b1, sw2, sb2, tw2, tb2)
    return gamma, beta


# ---------------------------------------------------------------------------
# Kernel 2: streaming FiLM modulation  out = gamma * x + beta
# ---------------------------------------------------------------------------
def _modulate_kernel(g_ref, b_ref, x_ref, o_ref):
    # gamma/beta are pre-cast outside the kernel (f32 for f32 x, bf16 for bf16 x),
    # so the FMA runs in the natural dtype and is cast only on store.
    o_ref[...] = (g_ref[...] * x_ref[...] + b_ref[...]).astype(o_ref.dtype)


def _modulate(x2, g2, b2):
    """Elementwise FiLM on a lane-dense 2D layout, tiled + auto double-buffered."""
    R, L = x2.shape
    itemsize = jnp.dtype(x2.dtype).itemsize
    tile_bytes, vmem_limit = _tile_budget()
    rt, lt = _pick_tiles(R, L, itemsize, tile_bytes)
    grid = (pl.cdiv(R, rt), pl.cdiv(L, lt))             # rows outer, lanes inner

    x_spec = pl.BlockSpec((rt, lt), lambda i, j: (i, j))
    if g2.shape[1] == 1:
        # gamma/beta broadcast over the lane (spatial) axis; constant block
        # index across the inner j axis means Pallas re-uses them without
        # re-DMA on every lane step.
        g_spec = pl.BlockSpec((rt, 1), lambda i, j: (i, 0))
    else:
        # 2D x path: gamma/beta tiled exactly like x.
        g_spec = pl.BlockSpec((rt, lt), lambda i, j: (i, j))

    g_itemsize = jnp.dtype(g2.dtype).itemsize
    cost = pl.CostEstimate(
        flops=2 * R * L,
        transcendentals=0,
        bytes_accessed=2 * R * L * itemsize + (g2.size + b2.size) * g_itemsize,
    )

    return pl.pallas_call(
        _modulate_kernel,
        out_shape=jax.ShapeDtypeStruct((R, L), x2.dtype),
        grid=grid,
        in_specs=[g_spec, g_spec, x_spec],
        out_specs=x_spec,
        compiler_params=pltpu.CompilerParams(
            dimension_semantics=("parallel", "parallel"),
            vmem_limit_bytes=vmem_limit,
        ),
        cost_estimate=cost,
    )(g2, b2, x2)


# ---------------------------------------------------------------------------
# Public forward
# ---------------------------------------------------------------------------
def film2_forward(x, c, params):
    """FiLM_2 forward. x: (B, C, H, W) (any (B, C, ...)) or (B, C); c: (B, D_cond)."""
    _, vmem_limit = _tile_budget()
    gamma, beta = _film_params(c, params, vmem_limit)   # (B, C) f32, computed once

    # For 16-bit float activations, do the streaming FMA in the narrow dtype
    # (halves vreg pressure / VALU work on v6e/v7x; compute stays DMA-hidden).
    if jnp.issubdtype(x.dtype, jnp.floating) and jnp.dtype(x.dtype).itemsize < 4:
        gamma = gamma.astype(x.dtype)
        beta = beta.astype(x.dtype)

    if x.ndim > 2:
        B, C = x.shape[0], x.shape[1]
        hw = 1
        for d in x.shape[2:]:
            hw *= d
        x2 = x.reshape(B * C, hw)                        # lane-dense spatial axis
        g2 = gamma.reshape(B * C, 1)
        b2 = beta.reshape(B * C, 1)
        out2 = _modulate(x2, g2, b2)
        return out2.reshape(x.shape)

    # 2D path: gamma/beta have exactly x's shape.  If C is not lane-dense
    # (< / not multiple of 128), reflow everything identically to a lane-dense
    # layout so stores are full-width vst instead of masked vst.msk.
    B, C = x.shape
    if C % 128 != 0 and (B * C) % 128 == 0:
        N = B * C
        lane = 128
        cand = 2048
        while cand >= 128:
            if N % cand == 0:
                lane = cand
                break
            cand -= 128
        x2 = x.reshape(N // lane, lane)
        g2 = gamma.reshape(N // lane, lane)
        b2 = beta.reshape(N // lane, lane)
        return _modulate(x2, g2, b2).reshape(x.shape)

    return _modulate(x, gamma, beta)


# ---------------------------------------------------------------------------
# Params init + pure-JAX reference
# ---------------------------------------------------------------------------
def init_params(key, in_features, conditioning_dim, dtype=jnp.float32):
    """Deterministic init of the two MLPs (weights stored as (in, out))."""
    hidden = in_features // 2
    ks = jax.random.split(key, 8)

    def lin(kw, kb, fan_in, fan_out):
        bound = 1.0 / jnp.sqrt(fan_in)
        w = jax.random.uniform(kw, (fan_in, fan_out), dtype, -bound, bound)
        b = jax.random.uniform(kb, (1, fan_out), dtype, -bound, bound)
        return w, b

    sw1, sb1 = lin(ks[0], ks[1], conditioning_dim, hidden)
    sw2, sb2 = lin(ks[2], ks[3], hidden, in_features)
    tw1, tb1 = lin(ks[4], ks[5], conditioning_dim, hidden)
    tw2, tb2 = lin(ks[6], ks[7], hidden, in_features)
    return (sw1, sb1, sw2, sb2, tw1, tb1, tw2, tb2)


def film2_reference(x, c, params):
    (sw1, sb1, sw2, sb2, tw1, tb1, tw2, tb2) = params
    gamma = jnp.maximum(c @ sw1 + sb1, 0.0) @ sw2 + sb2
    beta = jnp.maximum(c @ tw1 + tb1, 0.0) @ tw2 + tb2
    if x.ndim > 2:
        gamma = gamma.reshape(gamma.shape + (1,) * (x.ndim - 2))
        beta = beta.reshape(beta.shape + (1,) * (x.ndim - 2))
    return gamma * x + beta


if __name__ == "__main__":
    B, C, H, W = 2, 4, 16, 16           # in_features = C = 4
    D_COND = 8                          # conditioning_dim = 8

    key = jax.random.PRNGKey(0)
    kx, kc, kp, kx2, kx3, kp3 = jax.random.split(key, 6)
    x = jax.random.normal(kx, (B, C, H, W), jnp.float32)
    c = jax.random.normal(kc, (B, D_COND), jnp.float32)
    params = init_params(kp, C, D_COND)

    # 4D (NCHW) path, f32
    out = jax.block_until_ready(film2_forward(x, c, params))
    ref = film2_reference(x, c, params)
    assert out.shape == x.shape
    assert jnp.allclose(out, ref, atol=1e-5, rtol=1e-5), "4D mismatch vs reference"

    # 4D path, bf16 activations (gamma/beta pre-cast, bf16 FMA in-kernel)
    x_bf16 = x.astype(jnp.bfloat16)
    out_bf16 = jax.block_until_ready(film2_forward(x_bf16, c, params))
    assert out_bf16.shape == x.shape and out_bf16.dtype == jnp.bfloat16
    assert jnp.allclose(out_bf16.astype(jnp.float32), ref, atol=1e-1, rtol=1e-1), \
        "4D bf16 mismatch vs reference"

    # 2D path (narrow C, keeps small-shape fallback layout)
    x2d = jax.random.normal(kx2, (B, C), jnp.float32)
    out2d = jax.block_until_ready(film2_forward(x2d, c, params))
    ref2d = film2_reference(x2d, c, params)
    assert out2d.shape == x2d.shape
    assert jnp.allclose(out2d, ref2d, atol=1e-5, rtol=1e-5), "2D mismatch vs reference"

    # 2D path exercising the lane-dense reflow (C=64 < 128, B*C multiple of 128)
    B3, C3 = 4, 64
    params3 = init_params(kp3, C3, D_COND)
    c3 = jax.random.normal(kc, (B3, D_COND), jnp.float32)
    x3 = jax.random.normal(kx3, (B3, C3), jnp.float32)
    out3 = jax.block_until_ready(film2_forward(x3, c3, params3))
    ref3 = film2_reference(x3, c3, params3)
    assert out3.shape == x3.shape
    assert jnp.allclose(out3, ref3, atol=1e-5, rtol=1e-5), "2D reflow mismatch vs reference"

    print("KERNEL_OK")
</pallas_src>

<mosaic_0001>
module attributes {stable_mosaic.version = 11 : i64} {
  func.func @_film_params_kernel(%arg0: memref<2x8xf32, #tpu.memory_space<vmem>>, %arg1: memref<8x4xf32, #tpu.memory_space<vmem>>, %arg2: memref<1x4xf32, #tpu.memory_space<vmem>>, %arg3: memref<2x4xf32, #tpu.memory_space<vmem>>, %arg4: memref<1x4xf32, #tpu.memory_space<vmem>>, %arg5: memref<2x4xf32, #tpu.memory_space<vmem>>, %arg6: memref<1x4xf32, #tpu.memory_space<vmem>>, %arg7: memref<2x4xf32, #tpu.memory_space<vmem>>, %arg8: memref<2x4xf32, #tpu.memory_space<vmem>>) attributes {dimension_semantics = [], scalar_prefetch = 0 : i64, scratch_operands = 0 : i64, tpu.core_type = #tpu.core_type<tc>} {
    %c0 = arith.constant 0 : index
    %c0_0 = arith.constant 0 : index
    %0 = vector.load %arg0[%c0, %c0_0] : memref<2x8xf32, #tpu.memory_space<vmem>>, vector<2x8xf32>
    %c0_1 = arith.constant 0 : index
    %c0_2 = arith.constant 0 : index
    %1 = vector.load %arg1[%c0_1, %c0_2] : memref<8x4xf32, #tpu.memory_space<vmem>>, vector<8x4xf32>
    %cst = arith.constant dense<0.000000e+00> : vector<2x4xf32>
    %2 = tpu.matmul %0, %1, %cst {dimension_numbers = #tpu.dot_dimension_numbers<[1], [0], [0], [1], [0, 0, 1, 1], [], []>} : vector<2x8xf32>, vector<8x4xf32>, vector<2x4xf32> -> vector<2x4xf32>
    %c0_3 = arith.constant 0 : index
    %c0_4 = arith.constant 0 : index
    %3 = vector.load %arg2[%c0_3, %c0_4] : memref<1x4xf32, #tpu.memory_space<vmem>>, vector<1x4xf32>
    %4 = vector.broadcast %3 : vector<1x4xf32> to vector<2x4xf32>
    %5 = arith.addf %2, %4 : vector<2x4xf32>
    %cst_5 = arith.constant 0.000000e+00 : f32
    %6 = vector.broadcast %cst_5 : f32 to vector<2x4xf32>
    %7 = arith.maximumf %5, %6 : vector<2x4xf32>
    %8 = vector.extract_strided_slice %7 {offsets = [0, 0], sizes = [2, 2], strides = [1, 1]} : vector<2x4xf32> to vector<2x2xf32>
    %9 = vector.extract_strided_slice %7 {offsets = [0, 2], sizes = [2, 2], strides = [1, 1]} : vector<2x4xf32> to vector<2x2xf32>
    %c0_6 = arith.constant 0 : index
    %c0_7 = arith.constant 0 : index
    %10 = vector.load %arg3[%c0_6, %c0_7] : memref<2x4xf32, #tpu.memory_space<vmem>>, vector<2x4xf32>
    %cst_8 = arith.constant dense<0.000000e+00> : vector<2x4xf32>
    %11 = tpu.matmul %8, %10, %cst_8 {dimension_numbers = #tpu.dot_dimension_numbers<[1], [0], [0], [1], [0, 0, 1, 1], [], []>} : vector<2x2xf32>, vector<2x4xf32>, vector<2x4xf32> -> vector<2x4xf32>
    %c0_9 = arith.constant 0 : index
    %c0_10 = arith.constant 0 : index
    %12 = vector.load %arg4[%c0_9, %c0_10] : memref<1x4xf32, #tpu.memory_space<vmem>>, vector<1x4xf32>
    %13 = vector.broadcast %12 : vector<1x4xf32> to vector<2x4xf32>
    %14 = arith.addf %11, %13 : vector<2x4xf32>
    %c0_11 = arith.constant 0 : index
    %c0_12 = arith.constant 0 : index
    %15 = vector.load %arg7[%c0_11, %c0_12] : memref<2x4xf32, #tpu.memory_space<vmem>>, vector<2x4xf32>
    tpu.vector_store %arg7[%c0_11, %c0_12], %14 {strides = array<i32>} : memref<2x4xf32, #tpu.memory_space<vmem>>, vector<2x4xf32>,
    %c0_13 = arith.constant 0 : index
    %c0_14 = arith.constant 0 : index
    %16 = vector.load %arg5[%c0_13, %c0_14] : memref<2x4xf32, #tpu.memory_space<vmem>>, vector<2x4xf32>
    %cst_15 = arith.constant dense<0.000000e+00> : vector<2x4xf32>
    %17 = tpu.matmul %9, %16, %cst_15 {dimension_numbers = #tpu.dot_dimension_numbers<[1], [0], [0], [1], [0, 0, 1, 1], [], []>} : vector<2x2xf32>, vector<2x4xf32>, vector<2x4xf32> -> vector<2x4xf32>
    %c0_16 = arith.constant 0 : index
    %c0_17 = arith.constant 0 : index
    %18 = vector.load %arg6[%c0_16, %c0_17] : memref<1x4xf32, #tpu.memory_space<vmem>>, vector<1x4xf32>
    %19 = vector.broadcast %18 : vector<1x4xf32> to vector<2x4xf32>
    %20 = arith.addf %17, %19 : vector<2x4xf32>
    %c0_18 = arith.constant 0 : index
    %c0_19 = arith.constant 0 : index
    %21 = vector.load %arg8[%c0_18, %c0_19] : memref<2x4xf32, #tpu.memory_space<vmem>>, vector<2x4xf32>
    tpu.vector_store %arg8[%c0_18, %c0_19], %20 {strides = array<i32>} : memref<2x4xf32, #tpu.memory_space<vmem>>, vector<2x4xf32>,
    return
  }
}

</mosaic_0001>

<llo_original>
// kernel: tpu_custom_call.1
$region0: #{tpu_custom_call.1}
  #allocation0 [shape = 'u32[]', space=smem, size = 0x4, offset = 0x4, fixed_abs, tag = 'smem constant byte address 0x4 - core index']
  #allocation1 [shape = 'u32[72,128]{1,0:T(1,128)}', space=vmem, size = 0x9000, scoped, tag = 'internal scratch']
  %s0 = inlined_call_operand.vmem [shape: f32[2,8], index: 0, kind: input, shape index: {}]
  %s1 = inlined_call_operand.vmem [shape: f32[8,4], index: 1, kind: input, shape index: {}]
  %s2 = inlined_call_operand.vmem [shape: f32[1,4], index: 2, kind: input, shape index: {}]
  %s3 = inlined_call_operand.vmem [shape: f32[2,4], index: 3, kind: input, shape index: {}]
  %s4 = inlined_call_operand.vmem [shape: f32[1,4], index: 4, kind: input, shape index: {}]
  %s5 = inlined_call_operand.vmem [shape: f32[2,4], index: 5, kind: input, shape index: {}]
  %s6 = inlined_call_operand.vmem [shape: f32[1,4], index: 6, kind: input, shape index: {}]
  %s7 = inlined_call_operand.hbm [shape: f32[2,4], index: 7, kind: output, shape index: {0}]
  %s8 = inlined_call_operand.hbm [shape: f32[2,4], index: 8, kind: output, shape index: {1}]
  %9 = xla_tuple %s7, %s8
  %s10 = sld [smem:[#allocation0]]
  $region46: #{tpu_custom_call.1} parent=0
    _
  %s12 = ssub.s32 1, %s10
  %s13 = scalar_select 0, %s12, %s10
  $region1: #{tpu_custom_call.1} parent=0
    #allocation2 [shape = 'u8[1024]{0}', space=vmem, size = 0x400, scoped, tag = 'output window, operand 0, single buffered']
    #allocation3 [shape = 's32[1]{0}', space=sflag, size = 0x4, scoped, tag = 'scoped memory for tpu_custom_call.1']
    #allocation4 [shape = 'u8[1024]{0}', space=vmem, size = 0x400, scoped, tag = 'output window, operand 1, single buffered']
    #allocation5 [shape = 's32[1]{0}', space=sflag, size = 0x4, scoped, tag = 'scoped memory for tpu_custom_call.1']
    %14 = vsyncpa [#allocation3], 0
    %15 = vsyncpa [#allocation5], 0
    // Predicated region
    $region2: #{tpu_custom_call.1} parent=1 // pred_check
      _
    $region3: #{tpu_custom_call.1} parent=1 // pred_check_branch
      %17 = sbr.rel (0) target = $region5
    $region4: #{tpu_custom_call.1} parent=1 // pred_region
      _
    $region5: #{tpu_custom_call.1} parent=1 // pred_fallthru
      _
    // Predicated region
    $region6: #{tpu_custom_call.1} parent=1 // pred_check
      _
    $region7: #{tpu_custom_call.1} parent=1 // pred_check_branch
      %19 = sbr.rel (0) target = $region9
    $region8: #{tpu_custom_call.1} parent=1 // pred_region
      _
    $region9: #{tpu_custom_call.1} parent=1 // pred_fallthru
      _
    // Predicated region
    $region10: #{tpu_custom_call.1} parent=1 // pred_check
      _
    $region11: #{tpu_custom_call.1} parent=1 // pred_check_branch
      %21 = sbr.rel (0) target = $region13
    $region12: #{tpu_custom_call.1} parent=1 // pred_region
      _
    $region13: #{tpu_custom_call.1} parent=1 // pred_fallthru
      _
    // Predicated region
    $region14: #{tpu_custom_call.1} parent=1 // pred_check
      _
    $region15: #{tpu_custom_call.1} parent=1 // pred_check_branch
      %23 = sbr.rel (0) target = $region17
    $region16: #{tpu_custom_call.1} parent=1 // pred_region
      _
    $region17: #{tpu_custom_call.1} parent=1 // pred_fallthru
      _
    // Predicated region
    $region18: #{tpu_custom_call.1} parent=1 // pred_check
      _
    $region19: #{tpu_custom_call.1} parent=1 // pred_check_branch
      %25 = sbr.rel (0) target = $region21
    $region20: #{tpu_custom_call.1} parent=1 // pred_region
      _
    $region21: #{tpu_custom_call.1} parent=1 // pred_fallthru
      _
    // Predicated region
    $region22: #{tpu_custom_call.1} parent=1 // pred_check
      _
    $region23: #{tpu_custom_call.1} parent=1 // pred_check_branch
      %27 = sbr.rel (0) target = $region25
    $region24: #{tpu_custom_call.1} parent=1 // pred_region
      _
    $region25: #{tpu_custom_call.1} parent=1 // pred_fallthru
      _
    // Predicated region
    $region26: #{tpu_custom_call.1} parent=1 // pred_check
      _
    $region27: #{tpu_custom_call.1} parent=1 // pred_check_branch
      %29 = sbr.rel (0) target = $region29
    $region28: #{tpu_custom_call.1} parent=1 // pred_region
      _
    $region29: #{tpu_custom_call.1} parent=1 // pred_fallthru
      _
    %v30 = vld [vmem:[%s0] sm:$0x3]
    %v31 = vld [vmem:[%s1] sm:$0xff]
    %v32 = vld [vmem:[%s2] sm:$0x1]
    %v34 = vperm.slane %v32, 0
    %vm36 = vcmask 64512
    %v38 = vsel %vm36, %v30, 0
    %40 = vmatpush.msra.mxu0 0.0
    %41 = vmatpush.msra.mxu0 0.0
    %42 = vmatpush.msra.mxu0 0.0
    %43 = vmatpush.msra.mxu0 0.0
    %44 = vmatpush.msra.mxu0 0.0
    %45 = vmatpush.msra.mxu0 0.0
    %46 = vmatpush.msra.mxu0 0.0
    %47 = vmatpush.msra.mxu0 0.0
    %48 = vmatpush.msra.mxu0 0.0
    %49 = vmatpush.msra.mxu0 0.0
    %50 = vmatpush.msra.mxu0 0.0
    %51 = vmatpush.msra.mxu0 0.0
    %52 = vmatpush.msra.mxu0 0.0
    %53 = vmatpush.msra.mxu0 0.0
    %54 = vmatpush.msra.mxu0 0.0
    %55 = vmatpush.msra.mxu0 %v31
    %56 = vmatmul.f32.gmra.mxu0 %v38
    %v57 = vpop.f32.mrf.mxu0
    %v58 = vadd.f32 %v34, %v57
    %59 = vdwg.mxu0
    %v60 = vmax.f32 %v58, 0.0
    %v61 = vld [vmem:[%s3] sm:$0x3]
    %v62 = vld [vmem:[%s4] sm:$0x1]
    %v64 = vperm.slane %v62, 0
    %vm66 = vcmask 15360
    %v68 = vsel %vm66, %v60, 0
    %vm70 = vcmask 1041408
    %v72 = vsel %vm70, %v61, 0
    %74 = vmatpush.msra.mxu0 0.0
    %75 = vmatpush.msra.mxu0 0.0
    %76 = vmatpush.msra.mxu0 0.0
    %77 = vmatpush.msra.mxu0 0.0
    %78 = vmatpush.msra.mxu0 0.0
    %79 = vmatpush.msra.mxu0 0.0
    %80 = vmatpush.msra.mxu0 0.0
    %81 = vmatpush.msra.mxu0 0.0
    %82 = vmatpush.msra.mxu0 0.0
    %83 = vmatpush.msra.mxu0 0.0
    %84 = vmatpush.msra.mxu0 0.0
    %85 = vmatpush.msra.mxu0 0.0
    %86 = vmatpush.msra.mxu0 0.0
    %87 = vmatpush.msra.mxu0 0.0
    %88 = vmatpush.msra.mxu0 0.0
    %89 = vmatpush.msra.mxu0 %v72
    %90 = vmatmul.f32.gmra.mxu0 %v68
    %v91 = vpop.f32.mrf.mxu0
    %v92 = vadd.f32 %v64, %v91
    %93 = vdwg.mxu0
    %vm94 = vcmask 25600
    %95 = vst.msk [vmem:[#allocation2] sm:$0x3] %vm94, %v92
    %v96 = vld [vmem:[%s5] sm:$0x3]
    %v97 = vld [vmem:[%s6] sm:$0x1]
    %v99 = vperm.slane %v97, 0
    %101 = vrot.lane.b32.xlu0 %v60, 126
    %v102 = vpop.permute.xlu0 %101
    %v103 = vsel %vm66, %v102, 0
    %v106 = vsel %vm70, %v96, 0
    %108 = vmatpush.msra.mxu0 0.0
    %109 = vmatpush.msra.mxu0 0.0
    %110 = vmatpush.msra.mxu0 0.0
    %111 = vmatpush.msra.mxu0 0.0
    %112 = vmatpush.msra.mxu0 0.0
    %113 = vmatpush.msra.mxu0 0.0
    %114 = vmatpush.msra.mxu0 0.0
    %115 = vmatpush.msra.mxu0 0.0
    %116 = vmatpush.msra.mxu0 0.0
    %117 = vmatpush.msra.mxu0 0.0
    %118 = vmatpush.msra.mxu0 0.0
    %119 = vmatpush.msra.mxu0 0.0
    %120 = vmatpush.msra.mxu0 0.0
    %121 = vmatpush.msra.mxu0 0.0
    %122 = vmatpush.msra.mxu0 0.0
    %123 = vmatpush.msra.mxu0 %v106
    %124 = vmatmul.f32.gmra.mxu0 %v103
    %v125 = vpop.f32.mrf.mxu0
    %v126 = vadd.f32 %v99, %v125
    %127 = vdwg.mxu0
    %128 = vst.msk [vmem:[#allocation4] sm:$0x3] %vm94, %v126
    // Predicated region
    $region30: #{tpu_custom_call.1} parent=1 // pred_check
      _
    $region31: #{tpu_custom_call.1} parent=1 // pred_check_branch
      %130 = sbr.rel (0) target = $region33
    $region32: #{tpu_custom_call.1} parent=1 // pred_region
      %132 = vsyncadd [#allocation3], 0
      %s134 = sshll.u32 [#allocation2], 4
      %s135 = int_to_ptr.vmem [resolvable:$true] %s134
      %s136 = sshll.u32 %s7, 4
      %s137 = int_to_ptr.hbm [resolvable:$true] %s136
      %139 = dma.vmem_to_hbm [thread:$0]  %s135, 32, %s137, [#allocation3]
    $region33: #{tpu_custom_call.1} parent=1 // pred_fallthru
      _
    // Predicated region
    $region34: #{tpu_custom_call.1} parent=1 // pred_check
      _
    $region35: #{tpu_custom_call.1} parent=1 // pred_check_branch
      %141 = sbr.rel (0) target = $region37
    $region36: #{tpu_custom_call.1} parent=1 // pred_region
      %143 = vsyncadd [#allocation5], 0
      %s145 = sshll.u32 [#allocation4], 4
      %s146 = int_to_ptr.vmem [resolvable:$true] %s145
      %s147 = sshll.u32 %s8, 4
      %s148 = int_to_ptr.hbm [resolvable:$true] %s147
      %150 = dma.vmem_to_hbm [thread:$0]  %s146, 32, %s148, [#allocation5]
    $region37: #{tpu_custom_call.1} parent=1 // pred_fallthru
      _
    // Predicated region
    $region38: #{tpu_custom_call.1} parent=1 // pred_check
      _
    $region39: #{tpu_custom_call.1} parent=1 // pred_check_branch
      %152 = sbr.rel (0) target = $region41
    $region40: #{tpu_custom_call.1} parent=1 // pred_region
      %154 = dma.done [#allocation3], 32
    $region41: #{tpu_custom_call.1} parent=1 // pred_fallthru
      _
    // Predicated region
    $region42: #{tpu_custom_call.1} parent=1 // pred_check
      _
    $region43: #{tpu_custom_call.1} parent=1 // pred_check_branch
      %156 = sbr.rel (0) target = $region45
    $region44: #{tpu_custom_call.1} parent=1 // pred_region
      %158 = dma.done [#allocation5], 32
    $region45: #{tpu_custom_call.1} parent=1 // pred_fallthru
      _
    %159 = vsyncpa [#allocation3], 1
    %160 = vsyncpa [#allocation5], 1

</llo_original>
